<compile_context>
chip_gen: v6e
topology: v6e:2x2x1
jax: 0.10.0
libtpu: 0.0.40
codegen_flags: <defaults>
</compile_context>

<pallas_src>
import functools

import jax
import jax.numpy as jnp
from jax.experimental import pallas as pl
from jax.experimental.pallas import tpu as pltpu


def _round_up(v, m):
    return ((v + m - 1) // m) * m


def _mlp_kernel(n_layers, d_in, x_ref, *refs):
    """Fused MLP forward for one batch tile (feature-major layout).

    x_ref:  (d_in, tile_n) f32
    refs = (w0, b0, w1, b1, ..., w_{L-1}, b_{L-1}, out_ref)
      w_l: (d_out_l, d_in_l)  -- torch layout (out, in); dtype = compute dtype
           (layer 0 stays f32 when it takes the VPU outer-product path)
      b_l: (d_out_l, 1) f32
    out_ref: (d_out_last, tile_n) f32
    Hidden layers use tanh (f32 on the EUP); last layer is linear.
    """
    out_ref = refs[-1]
    param_refs = refs[:-1]

    a = x_ref[...].astype(jnp.float32)          # matches torch .float()
    for l in range(n_layers):
        w_ref = param_refs[2 * l]
        b = param_refs[2 * l + 1][...]          # (d_out, 1), f32
        if l == 0 and d_in <= 4:
            # K = d_in is tiny (1 for a 1-D PINN): a degenerate outer product.
            # Keep it on the VPU (broadcast multiply-add), skip the MXU pass.
            w = w_ref[...].astype(jnp.float32)  # no-op cast (kept f32 in wrapper)
            z = b
            for k in range(d_in):
                z = z + w[:, k:k + 1] * a[k:k + 1, :]
        else:
            # Weights already in the matmul operand dtype (pre-cast in the
            # wrapper); accumulate in f32 on the MXU.
            z = jnp.dot(w_ref[...], a.astype(w_ref.dtype),
                        preferred_element_type=jnp.float32) + b
        if l < n_layers - 1:
            a = jnp.tanh(z)                     # f32 tanh (exact vs torch ref)
        else:
            a = z
    out_ref[...] = a.astype(out_ref.dtype)      # lane-dense store: last dim = tile_n


def mlp_forward(x, weights, biases, *, tile_n=4096, compute_dtype=jnp.float32):
    """Run the fused MLP Pallas kernel.

    x:       (N, d_in) float32
    weights: list of (d_out_l, d_in_l) float32   (torch layout: out, in)
    biases:  list of (d_out_l, 1)      float32
    compute_dtype: dtype of the MXU operands (f32 default; bf16 is valid on
                   all of v5e/v6e/v7x and trades ~1e-3 rel error for speed).
    Returns: (N, d_out_last) float32
    """
    n_layers = len(weights)
    N, d_in = x.shape
    d_out = weights[-1].shape[0]
    d_max = max(w.shape[0] for w in weights)

    # ---- batch-tile selection -------------------------------------------
    # Lane-aligned tile; don't pad a tiny batch up to a huge tile.
    tile_n = max(128, (int(tile_n) // 128) * 128)
    tile_n = min(tile_n, max(128, _round_up(N, 128)))
    n_tiles = pl.cdiv(N, tile_n)
    if N > 128:
        # Force an EVEN step count (>= 2) so v7x's two TensorCores get
        # balanced work along the "parallel" batch axis.
        n_tiles = max(2, n_tiles)
        n_tiles += n_tiles % 2
        tile_n = max(128, _round_up(pl.cdiv(N, n_tiles), 128))
        n_tiles = max(2, pl.cdiv(N, tile_n))
        n_tiles += n_tiles % 2
    n_pad = n_tiles * tile_n

    # ---- wrapper-side data prep (single HBM pass) ------------------------
    # Feature-major layout: (d_in, n_pad).  For d_in == 1 the transpose is a
    # free reshape; jnp.pad writes the padded slab once (no zeros + DUS).
    x_t = x.T
    if n_pad != N:
        x_t = jnp.pad(x_t, ((0, 0), (0, n_pad - N)))

    # Pre-cast weights to the matmul operand dtype once (removes per-step
    # VPU casts and halves weight DMA bytes in the bf16 path).  Layer 0 stays
    # f32 when it uses the exact VPU outer-product path.
    weights_c = []
    for l, w in enumerate(weights):
        if l == 0 and d_in <= 4:
            weights_c.append(w.astype(jnp.float32))
        else:
            weights_c.append(w.astype(compute_dtype))

    grid = (n_tiles,)

    in_specs = [pl.BlockSpec((d_in, tile_n), lambda i: (0, i))]
    flat_params = []
    for w, b in zip(weights_c, biases):
        # Full-array, grid-invariant blocks (a few KB total): the constant
        # index_map means Pallas keeps them resident in VMEM and never
        # re-DMAs them across grid steps (no double-buffering needed).
        in_specs.append(pl.BlockSpec(w.shape, lambda i: (0, 0)))
        in_specs.append(pl.BlockSpec(b.shape, lambda i: (0, 0)))
        flat_params.extend([w, b])
    out_specs = pl.BlockSpec((d_out, tile_n), lambda i: (0, i))

    # ---- cost estimate (advisory, helps XLA schedule around the call) ----
    dims = [d_in] + [w.shape[0] for w in weights]
    flops = 2 * N * sum(dims[i] * dims[i + 1] for i in range(n_layers))
    transcendentals = N * sum(dims[1:-1])
    params_bytes = sum(w.size * w.dtype.itemsize for w in weights_c) + \
        sum(b.size * b.dtype.itemsize for b in biases)
    bytes_accessed = 4 * N * (d_in + d_out) + params_bytes
    cost = pl.CostEstimate(flops=int(flops),
                           transcendentals=int(transcendentals),
                           bytes_accessed=int(bytes_accessed))

    # ---- VMEM headroom (only set explicitly when a tile sweep needs it) ---
    # Per-step footprint: double-buffered I/O blocks + ~4 live f32 activation
    # slabs + resident params.
    vmem_needed = (2 * (d_in + d_out) * tile_n * 4
                   + 4 * d_max * tile_n * 4
                   + params_bytes)
    compiler_kwargs = dict(dimension_semantics=("parallel",))
    if vmem_needed > (12 << 20):          # approaching v5e's 16 MiB scoped default
        compiler_kwargs["vmem_limit_bytes"] = int(min(vmem_needed * 2, 48 << 20))

    kernel = functools.partial(_mlp_kernel, n_layers, d_in)

    out_t = pl.pallas_call(
        kernel,
        out_shape=jax.ShapeDtypeStruct((d_out, n_pad), jnp.float32),
        grid_spec=pltpu.PrefetchScalarGridSpec(
            num_scalar_prefetch=0,
            grid=grid,
            in_specs=in_specs,
            out_specs=out_specs,
        ),
        compiler_params=pltpu.CompilerParams(**compiler_kwargs),
        cost_estimate=cost,
    )(x_t, *flat_params)

    # (d_out, n_pad) -> (N, d_out) without a transpose copy when d_out == 1.
    if d_out == 1:
        return out_t.reshape(n_pad, 1)[:N]
    return out_t[:, :N].T


def init_params(layers, key):
    """Xavier-normal weights (gain=1.0), zero biases — matches the torch init.

    Weights kept in torch layout (d_out, d_in); biases as (d_out, 1) columns
    for clean lane-broadcast in the feature-major kernel.
    """
    weights, biases = [], []
    for i in range(len(layers) - 1):
        fan_in, fan_out = layers[i], layers[i + 1]
        key, sub = jax.random.split(key)
        std = (2.0 / (fan_in + fan_out)) ** 0.5
        w = std * jax.random.normal(sub, (fan_out, fan_in), dtype=jnp.float32)
        b = jnp.zeros((fan_out, 1), dtype=jnp.float32)
        weights.append(w)
        biases.append(b)
    return weights, biases


def mlp_forward_ref(x, weights, biases):
    """Pure-JAX reference (torch convention: x @ W.T + b)."""
    a = x.astype(jnp.float32)
    n = len(weights)
    for l in range(n):
        z = a @ weights[l].T + biases[l].T
        a = jnp.tanh(z) if l < n - 1 else z
    return a


if __name__ == "__main__":
    # Typical 1-D PINN interpolator: 1 input, 3 hidden layers of 32, 1 output.
    layers = [1, 32, 32, 32, 1]

    key = jax.random.PRNGKey(0)
    key, kx = jax.random.split(key)
    weights, biases = init_params(layers, key)

    # TODO(synk): loss()/forward_np() are host-side training utilities (MSE,
    # numpy conversion); only the forward pass is implemented as a kernel.

    # Batch of collocation points: 512 -> two 256-wide tiles (even step count).
    N = 512
    x = jax.random.uniform(kx, (N, layers[0]), dtype=jnp.float32)
    out = jax.block_until_ready(mlp_forward(x, weights, biases))
    ref = mlp_forward_ref(x, weights, biases)
    assert out.shape == (N, layers[-1])
    assert jnp.allclose(out, ref, atol=1e-5, rtol=1e-4), "mismatch vs reference"

    # Ragged batch exercises the padding path (300 -> 2 x 256).
    N2 = 300
    x2 = jax.random.uniform(jax.random.PRNGKey(1), (N2, layers[0]),
                            dtype=jnp.float32)
    out2 = jax.block_until_ready(mlp_forward(x2, weights, biases))
    ref2 = mlp_forward_ref(x2, weights, biases)
    assert out2.shape == (N2, layers[-1])
    assert jnp.allclose(out2, ref2, atol=1e-5, rtol=1e-4), "mismatch (ragged)"

    # Larger batch + bf16 MXU operands (accuracy-gated production path):
    # 4096 -> two 2048-wide tiles; f32 accumulation + f32 tanh are kept, so
    # the error vs the f32 reference stays ~1e-3.
    N3 = 4096
    x3 = jax.random.uniform(jax.random.PRNGKey(2), (N3, layers[0]),
                            dtype=jnp.float32)
    out3 = jax.block_until_ready(
        mlp_forward(x3, weights, biases, tile_n=4096,
                    compute_dtype=jnp.bfloat16))
    ref3 = mlp_forward_ref(x3, weights, biases)
    assert out3.shape == (N3, layers[-1])
    assert jnp.max(jnp.abs(out3 - ref3)) < 2e-2, "bf16 path diverged"

    print("KERNEL_OK")
</pallas_src>

<mosaic_0001>
module attributes {stable_mosaic.version = 11 : i64} {
  func.func @_mlp_kernel(%arg0: i32, %arg1: memref<1x256xf32, #tpu.memory_space<vmem>>, %arg2: memref<32x1xf32, #tpu.memory_space<vmem>>, %arg3: memref<32x1xf32, #tpu.memory_space<vmem>>, %arg4: memref<32x32xf32, #tpu.memory_space<vmem>>, %arg5: memref<32x1xf32, #tpu.memory_space<vmem>>, %arg6: memref<32x32xf32, #tpu.memory_space<vmem>>, %arg7: memref<32x1xf32, #tpu.memory_space<vmem>>, %arg8: memref<1x32xf32, #tpu.memory_space<vmem>>, %arg9: memref<1x1xf32, #tpu.memory_space<vmem>>, %arg10: memref<1x256xf32, #tpu.memory_space<vmem>>) attributes {dimension_semantics = [#tpu.dimension_semantics<parallel>], iteration_bounds = array<i64: 2>, scalar_prefetch = 0 : i64, scratch_operands = 0 : i64, tpu.core_type = #tpu.core_type<tc>, window_params = [{transform_indices = @transform_0, window_bounds = array<i64: 1, 256>}, {pipeline_mode = #tpu.pipeline_mode<synchronous>, transform_indices = @transform_1, window_bounds = array<i64: 32, 1>}, {pipeline_mode = #tpu.pipeline_mode<synchronous>, transform_indices = @transform_2, window_bounds = array<i64: 32, 1>}, {pipeline_mode = #tpu.pipeline_mode<synchronous>, transform_indices = @transform_3, window_bounds = array<i64: 32, 32>}, {pipeline_mode = #tpu.pipeline_mode<synchronous>, transform_indices = @transform_4, window_bounds = array<i64: 32, 1>}, {pipeline_mode = #tpu.pipeline_mode<synchronous>, transform_indices = @transform_5, window_bounds = array<i64: 32, 32>}, {pipeline_mode = #tpu.pipeline_mode<synchronous>, transform_indices = @transform_6, window_bounds = array<i64: 32, 1>}, {pipeline_mode = #tpu.pipeline_mode<synchronous>, transform_indices = @transform_7, window_bounds = array<i64: 1, 32>}, {pipeline_mode = #tpu.pipeline_mode<synchronous>, transform_indices = @transform_8, window_bounds = array<i64: 1, 1>}, {transform_indices = @transform_9, window_bounds = array<i64: 1, 256>}]} {
    %c0 = arith.constant 0 : index
    %c0_0 = arith.constant 0 : index
    %0 = vector.load %arg1[%c0, %c0_0] : memref<1x256xf32, #tpu.memory_space<vmem>>, vector<1x256xf32>
    %c0_1 = arith.constant 0 : index
    %c0_2 = arith.constant 0 : index
    %1 = vector.load %arg3[%c0_1, %c0_2] : memref<32x1xf32, #tpu.memory_space<vmem>>, vector<32x1xf32>
    %c0_3 = arith.constant 0 : index
    %c0_4 = arith.constant 0 : index
    %2 = vector.load %arg2[%c0_3, %c0_4] : memref<32x1xf32, #tpu.memory_space<vmem>>, vector<32x1xf32>
    %3 = vector.broadcast %2 : vector<32x1xf32> to vector<32x256xf32>
    %4 = vector.broadcast %0 : vector<1x256xf32> to vector<32x256xf32>
    %5 = arith.mulf %3, %4 : vector<32x256xf32>
    %6 = vector.broadcast %1 : vector<32x1xf32> to vector<32x256xf32>
    %7 = arith.addf %6, %5 : vector<32x256xf32>
    %8 = math.tanh %7 : vector<32x256xf32>
    %c0_5 = arith.constant 0 : index
    %c0_6 = arith.constant 0 : index
    %9 = vector.load %arg5[%c0_5, %c0_6] : memref<32x1xf32, #tpu.memory_space<vmem>>, vector<32x1xf32>
    %c0_7 = arith.constant 0 : index
    %c0_8 = arith.constant 0 : index
    %10 = vector.load %arg4[%c0_7, %c0_8] : memref<32x32xf32, #tpu.memory_space<vmem>>, vector<32x32xf32>
    %cst = arith.constant dense<0.000000e+00> : vector<32x256xf32>
    %11 = tpu.matmul %10, %8, %cst {dimension_numbers = #tpu.dot_dimension_numbers<[1], [0], [0], [1], [0, 0, 1, 1], [], []>} : vector<32x32xf32>, vector<32x256xf32>, vector<32x256xf32> -> vector<32x256xf32>
    %12 = vector.broadcast %9 : vector<32x1xf32> to vector<32x256xf32>
    %13 = arith.addf %11, %12 : vector<32x256xf32>
    %14 = math.tanh %13 : vector<32x256xf32>
    %c0_9 = arith.constant 0 : index
    %c0_10 = arith.constant 0 : index
    %15 = vector.load %arg7[%c0_9, %c0_10] : memref<32x1xf32, #tpu.memory_space<vmem>>, vector<32x1xf32>
    %c0_11 = arith.constant 0 : index
    %c0_12 = arith.constant 0 : index
    %16 = vector.load %arg6[%c0_11, %c0_12] : memref<32x32xf32, #tpu.memory_space<vmem>>, vector<32x32xf32>
    %cst_13 = arith.constant dense<0.000000e+00> : vector<32x256xf32>
    %17 = tpu.matmul %16, %14, %cst_13 {dimension_numbers = #tpu.dot_dimension_numbers<[1], [0], [0], [1], [0, 0, 1, 1], [], []>} : vector<32x32xf32>, vector<32x256xf32>, vector<32x256xf32> -> vector<32x256xf32>
    %18 = vector.broadcast %15 : vector<32x1xf32> to vector<32x256xf32>
    %19 = arith.addf %17, %18 : vector<32x256xf32>
    %20 = math.tanh %19 : vector<32x256xf32>
    %c0_14 = arith.constant 0 : index
    %c0_15 = arith.constant 0 : index
    %21 = vector.load %arg9[%c0_14, %c0_15] : memref<1x1xf32, #tpu.memory_space<vmem>>, vector<1x1xf32>
    %c0_16 = arith.constant 0 : index
    %c0_17 = arith.constant 0 : index
    %22 = vector.load %arg8[%c0_16, %c0_17] : memref<1x32xf32, #tpu.memory_space<vmem>>, vector<1x32xf32>
    %cst_18 = arith.constant dense<0.000000e+00> : vector<1x256xf32>
    %23 = tpu.matmul %22, %20, %cst_18 {dimension_numbers = #tpu.dot_dimension_numbers<[1], [0], [0], [1], [0, 0, 1, 1], [], []>} : vector<1x32xf32>, vector<32x256xf32>, vector<1x256xf32> -> vector<1x256xf32>
    %24 = vector.broadcast %21 : vector<1x1xf32> to vector<1x256xf32>
    %25 = arith.addf %23, %24 : vector<1x256xf32>
    %c0_19 = arith.constant 0 : index
    %c0_20 = arith.constant 0 : index
    %26 = vector.load %arg10[%c0_19, %c0_20] : memref<1x256xf32, #tpu.memory_space<vmem>>, vector<1x256xf32>
    tpu.vector_store %arg10[%c0_19, %c0_20], %25 {strides = array<i32>} : memref<1x256xf32, #tpu.memory_space<vmem>>, vector<1x256xf32>,
    return
  }
  func.func @transform_0(%arg0: i32) -> (i32, i32) {
    %c0_i32 = arith.constant 0 : i32
    %c0_i32_0 = arith.constant 0 : i32
    return %c0_i32, %arg0 : i32, i32
  }
  func.func @transform_1(%arg0: i32) -> (i32, i32) {
    %c0_i32 = arith.constant 0 : i32
    %c0_i32_0 = arith.constant 0 : i32
    %c0_i32_1 = arith.constant 0 : i32
    return %c0_i32, %c0_i32_0 : i32, i32
  }
  func.func @transform_2(%arg0: i32) -> (i32, i32) {
    %c0_i32 = arith.constant 0 : i32
    %c0_i32_0 = arith.constant 0 : i32
    %c0_i32_1 = arith.constant 0 : i32
    return %c0_i32, %c0_i32_0 : i32, i32
  }
  func.func @transform_3(%arg0: i32) -> (i32, i32) {
    %c0_i32 = arith.constant 0 : i32
    %c0_i32_0 = arith.constant 0 : i32
    %c0_i32_1 = arith.constant 0 : i32
    return %c0_i32, %c0_i32_0 : i32, i32
  }
  func.func @transform_4(%arg0: i32) -> (i32, i32) {
    %c0_i32 = arith.constant 0 : i32
    %c0_i32_0 = arith.constant 0 : i32
    %c0_i32_1 = arith.constant 0 : i32
    return %c0_i32, %c0_i32_0 : i32, i32
  }
  func.func @transform_5(%arg0: i32) -> (i32, i32) {
    %c0_i32 = arith.constant 0 : i32
    %c0_i32_0 = arith.constant 0 : i32
    %c0_i32_1 = arith.constant 0 : i32
    return %c0_i32, %c0_i32_0 : i32, i32
  }
  func.func @transform_6(%arg0: i32) -> (i32, i32) {
    %c0_i32 = arith.constant 0 : i32
    %c0_i32_0 = arith.constant 0 : i32
    %c0_i32_1 = arith.constant 0 : i32
    return %c0_i32, %c0_i32_0 : i32, i32
  }
  func.func @transform_7(%arg0: i32) -> (i32, i32) {
    %c0_i32 = arith.constant 0 : i32
    %c0_i32_0 = arith.constant 0 : i32
    %c0_i32_1 = arith.constant 0 : i32
    return %c0_i32, %c0_i32_0 : i32, i32
  }
  func.func @transform_8(%arg0: i32) -> (i32, i32) {
    %c0_i32 = arith.constant 0 : i32
    %c0_i32_0 = arith.constant 0 : i32
    %c0_i32_1 = arith.constant 0 : i32
    return %c0_i32, %c0_i32_0 : i32, i32
  }
  func.func @transform_9(%arg0: i32) -> (i32, i32) {
    %c0_i32 = arith.constant 0 : i32
    %c0_i32_0 = arith.constant 0 : i32
    return %c0_i32, %arg0 : i32, i32
  }
}

</mosaic_0001>

<llo_original>
// kernel: tpu_custom_call.1
$region0: #{tpu_custom_call.1}
  #allocation0 [shape = 'u32[]', space=smem, size = 0x4, offset = 0x4, fixed_abs, tag = 'smem constant byte address 0x4 - core index']
  #allocation1 [shape = 'u32[144,128]{1,0:T(1,128)}', space=vmem, size = 0x12000, scoped, tag = 'internal scratch']
  #allocation2 [shape = 'f32[1,1]{1,0:T(1,128)S(1)}', space=vmem, size = 0x200, scoped, tag = 'scoped memory for tpu_custom_call.1']
  %s0 = inlined_call_operand.vmem [shape: f32[1,512], index: 0, kind: input, shape index: {}]
  %s1 = inlined_call_operand.vmem [shape: f32[32,1], index: 1, kind: input, shape index: {}]
  %s2 = inlined_call_operand.vmem [shape: f32[32,1], index: 2, kind: input, shape index: {}]
  %s3 = inlined_call_operand.vmem [shape: f32[32,32], index: 3, kind: input, shape index: {}]
  %s4 = inlined_call_operand.vmem [shape: f32[32,1], index: 4, kind: input, shape index: {}]
  %s5 = inlined_call_operand.vmem [shape: f32[32,32], index: 5, kind: input, shape index: {}]
  %s6 = inlined_call_operand.vmem [shape: f32[32,1], index: 6, kind: input, shape index: {}]
  %s7 = inlined_call_operand.vmem [shape: f32[1,32], index: 7, kind: input, shape index: {}]
  %s8 = inlined_call_operand.<no memory space> [shape: f32[1,1], index: 8, kind: input, shape index: {}]
  %s9 = inlined_call_operand.hbm [shape: f32[1,512], index: 9, kind: output, shape index: {}]
  %s10 = sld [smem:[#allocation0]]
  $region69: #{tpu_custom_call.1} parent=0
    _
  %s12 = ssub.s32 1, %s10
  %s13 = scalar_select 0, %s12, %s10
  %v14 = vstv %s8
  %15 = vst [vmem:[#allocation2] sm:$0x1] %v14
  $region1: #{tpu_custom_call.1} parent=0
    #allocation3 [shape = 'u8[2048]{0}', space=vmem, size = 0x800, scoped, tag = 'output window, operand 0']
    #allocation4 [shape = 's32[2]{0}', space=sflag, size = 0x8, scoped, tag = 'scoped memory for tpu_custom_call.1']
    %16 = vsyncpa [#allocation4], 0
    %s17 = scalar_lea.sflag [#allocation4], 1
    %18 = vsyncpa %s17, 0
    loop: start=0, step=1, limit=4
    $region2: #{tpu_custom_call.1} parent=1 // loop_pre_header
      _
    $region3: #{tpu_custom_call.1} parent=1 // loop_header
      %s20 = sphi 0, %s24
      %p21 = scmp.ge.s32.totalorder %s20, 4
      %s30 = sphi 0, %s32
      %s33 = sphi 0, %s30
      %s34 = sphi 0, %s33
      %s50 = sphi 0, %s34
      %s54 = sphi 0, %s54
      %s56 = sphi 0, %s54
      %s57 = sphi 0, %s56
      %s71 = sphi 0, %s57
      %s75 = sphi 0, %s75
      %s77 = sphi 0, %s75
      %s78 = sphi 0, %s77
      %s92 = sphi 0, %s78
      %s96 = sphi 0, %s96
      %s98 = sphi 0, %s96
      %s99 = sphi 0, %s98
      %s113 = sphi 0, %s99
      %s117 = sphi 0, %s117
      %s119 = sphi 0, %s117
      %s120 = sphi 0, %s119
      %s134 = sphi 0, %s120
      %s138 = sphi 0, %s138
      %s140 = sphi 0, %s138
      %s141 = sphi 0, %s140
      %s155 = sphi 0, %s141
      %s159 = sphi 0, %s159
      %s161 = sphi 0, %s159
      %s162 = sphi 0, %s161
      %s176 = sphi 0, %s162
      %s180 = sphi 0, %s180
      %s182 = sphi 0, %s180
      %s183 = sphi 0, %s182
      %s197 = sphi 0, %s183
      %s201 = sphi 0, %s201
      %s203 = sphi 0, %s201
      %s204 = sphi 0, %s203
      %s218 = sphi 0, %s204
      %s224 = sphi 0, %s226
      %s227 = sphi 0, %s224
      %s228 = sphi 0, %s227
      %s244 = sphi 0, %s228
    $region4: #{tpu_custom_call.1} parent=1 // loop_header_branch
      %23 = sbr.rel (%p21) target = $region8
    $region5: #{tpu_custom_call.1} parent=1 // loop_body
      %s25 = ssub.s32 %s20, 1
      %s26 = ssub.s32 %s20, 2
      %s27 = sadd.s32 %s20, 1
      %s28 = ssub.s32 %s20, %s27
      %p29 = scmp.eq.s32.totalorder %s28, 0
      %s31 = sadd.s32 %s30, 1
      %s32 = scalar_select %p29, %s30, %s31
      %p35 = pneg %p29
      %p36 = scmp.eq.s32.totalorder %s20, 1
      %p37 = por %p35, %p36
      %p38 = scmp.ne.s32.totalorder %s30, %s33
      %p39 = scmp.eq.s32.totalorder %s20, 0
      %p40 = por %p38, %p39
      %p41 = scmp.ne.s32.totalorder %s30, %s33
      %p42 = scmp.eq.s32.totalorder %s25, 1
      %p43 = por %p41, %p42
      %p44 = scmp.ne.s32.totalorder %s33, %s34
      %p45 = scmp.eq.s32.totalorder %s25, 0
      %p46 = por %p44, %p45
      %p47 = scmp.ne.s32.totalorder %s33, %s34
      %p48 = scmp.eq.s32.totalorder %s26, 1
      %p49 = por %p47, %p48
      %p51 = scmp.ne.s32.totalorder %s34, %s50
      %p52 = scmp.eq.s32.totalorder %s26, 0
      %p53 = por %p51, %p52
      %s55 = sadd.s32 %s54, 1
      %p58 = scmp.eq.s32.totalorder %s20, 1
      %p59 = scmp.ne.s32.totalorder %s54, %s56
      %p60 = scmp.eq.s32.totalorder %s20, 0
      %p61 = por %p59, %p60
      %p62 = scmp.ne.s32.totalorder %s54, %s56
      %p63 = scmp.eq.s32.totalorder %s25, 1
      %p64 = por %p62, %p63
      %p65 = scmp.ne.s32.totalorder %s56, %s57
      %p66 = scmp.eq.s32.totalorder %s25, 0
      %p67 = por %p65, %p66
      %p68 = scmp.ne.s32.totalorder %s56, %s57
      %p69 = scmp.eq.s32.totalorder %s26, 1
      %p70 = por %p68, %p69
      %p72 = scmp.ne.s32.totalorder %s57, %s71
      %p73 = scmp.eq.s32.totalorder %s26, 0
      %p74 = por %p72, %p73
      %s76 = sadd.s32 %s75, 1
      %p79 = scmp.eq.s32.totalorder %s20, 1
      %p80 = scmp.ne.s32.totalorder %s75, %s77
      %p81 = scmp.eq.s32.totalorder %s20, 0
      %p82 = por %p80, %p81
      %p83 = scmp.ne.s32.totalorder %s75, %s77
      %p84 = scmp.eq.s32.totalorder %s25, 1
      %p85 = por %p83, %p84
      %p86 = scmp.ne.s32.totalorder %s77, %s78
      %p87 = scmp.eq.s32.totalorder %s25, 0
      %p88 = por %p86, %p87
      %p89 = scmp.ne.s32.totalorder %s77, %s78
      %p90 = scmp.eq.s32.totalorder %s26, 1
      %p91 = por %p89, %p90
      %p93 = scmp.ne.s32.totalorder %s78, %s92
      %p94 = scmp.eq.s32.totalorder %s26, 0
      %p95 = por %p93, %p94
      %s97 = sadd.s32 %s96, 1
      %p100 = scmp.eq.s32.totalorder %s20, 1
      %p101 = scmp.ne.s32.totalorder %s96, %s98
      %p102 = scmp.eq.s32.totalorder %s20, 0
      %p103 = por %p101, %p102
      %p104 = scmp.ne.s32.totalorder %s96, %s98
      %p105 = scmp.eq.s32.totalorder %s25, 1
      %p106 = por %p104, %p105
      %p107 = scmp.ne.s32.totalorder %s98, %s99
      %p108 = scmp.eq.s32.totalorder %s25, 0
      %p109 = por %p107, %p108
      %p110 = scmp.ne.s32.totalorder %s98, %s99
      %p111 = scmp.eq.s32.totalorder %s26, 1
      %p112 = por %p110, %p111
      %p114 = scmp.ne.s32.totalorder %s99, %s113
      %p115 = scmp.eq.s32.totalorder %s26, 0
      %p116 = por %p114, %p115
      %s118 = sadd.s32 %s117, 1
      %p121 = scmp.eq.s32.totalorder %s20, 1
      %p122 = scmp.ne.s32.totalorder %s117, %s119
      %p123 = scmp.eq.s32.totalorder %s20, 0
      %p124 = por %p122, %p123
      %p125 = scmp.ne.s32.totalorder %s117, %s119
      %p126 = scmp.eq.s32.totalorder %s25, 1
      %p127 = por %p125, %p126
      %p128 = scmp.ne.s32.totalorder %s119, %s120
      %p129 = scmp.eq.s32.totalorder %s25, 0
      %p130 = por %p128, %p129
      %p131 = scmp.ne.s32.totalorder %s119, %s120
      %p132 = scmp.eq.s32.totalorder %s26, 1
      %p133 = por %p131, %p132
      %p135 = scmp.ne.s32.totalorder %s120, %s134
      %p136 = scmp.eq.s32.totalorder %s26, 0
      %p137 = por %p135, %p136
      %s139 = sadd.s32 %s138, 1
      %p142 = scmp.eq.s32.totalorder %s20, 1
      %p143 = scmp.ne.s32.totalorder %s138, %s140
      %p144 = scmp.eq.s32.totalorder %s20, 0
      %p145 = por %p143, %p144
      %p146 = scmp.ne.s32.totalorder %s138, %s140
      %p147 = scmp.eq.s32.totalorder %s25, 1
      %p148 = por %p146, %p147
      %p149 = scmp.ne.s32.totalorder %s140, %s141
      %p150 = scmp.eq.s32.totalorder %s25, 0
      %p151 = por %p149, %p150
      %p152 = scmp.ne.s32.totalorder %s140, %s141
      %p153 = scmp.eq.s32.totalorder %s26, 1
      %p154 = por %p152, %p153
      %p156 = scmp.ne.s32.totalorder %s141, %s155
      %p157 = scmp.eq.s32.totalorder %s26, 0
      %p158 = por %p156, %p157
      %s160 = sadd.s32 %s159, 1
      %p163 = scmp.eq.s32.totalorder %s20, 1
      %p164 = scmp.ne.s32.totalorder %s159, %s161
      %p165 = scmp.eq.s32.totalorder %s20, 0
      %p166 = por %p164, %p165
      %p167 = scmp.ne.s32.totalorder %s159, %s161
      %p168 = scmp.eq.s32.totalorder %s25, 1
      %p169 = por %p167, %p168
      %p170 = scmp.ne.s32.totalorder %s161, %s162
      %p171 = scmp.eq.s32.totalorder %s25, 0
      %p172 = por %p170, %p171
      %p173 = scmp.ne.s32.totalorder %s161, %s162
      %p174 = scmp.eq.s32.totalorder %s26, 1
      %p175 = por %p173, %p174
      %p177 = scmp.ne.s32.totalorder %s162, %s176
      %p178 = scmp.eq.s32.totalorder %s26, 0
      %p179 = por %p177, %p178
      %s181 = sadd.s32 %s180, 1
      %p184 = scmp.eq.s32.totalorder %s20, 1
      %p185 = scmp.ne.s32.totalorder %s180, %s182
      %p186 = scmp.eq.s32.totalorder %s20, 0
      %p187 = por %p185, %p186
      %p188 = scmp.ne.s32.totalorder %s180, %s182
      %p189 = scmp.eq.s32.totalorder %s25, 1
      %p190 = por %p188, %p189
      %p191 = scmp.ne.s32.totalorder %s182, %s183
      %p192 = scmp.eq.s32.totalorder %s25, 0
      %p193 = por %p191, %p192
      %p194 = scmp.ne.s32.totalorder %s182, %s183
      %p195 = scmp.eq.s32.totalorder %s26, 1
      %p196 = por %p194, %p195
      %p198 = scmp.ne.s32.totalorder %s183, %s197
      %p199 = scmp.eq.s32.totalorder %s26, 0
      %p200 = por %p198, %p199
      %s202 = sadd.s32 %s201, 1
      %p205 = scmp.eq.s32.totalorder %s20, 1
      %p206 = scmp.ne.s32.totalorder %s201, %s203
      %p207 = scmp.eq.s32.totalorder %s20, 0
      %p208 = por %p206, %p207
      %p209 = scmp.ne.s32.totalorder %s201, %s203
      %p210 = scmp.eq.s32.totalorder %s25, 1
      %p211 = por %p209, %p210
      %p212 = scmp.ne.s32.totalorder %s203, %s204
      %p213 = scmp.eq.s32.totalorder %s25, 0
      %p214 = por %p212, %p213
      %p215 = scmp.ne.s32.totalorder %s203, %s204
      %p216 = scmp.eq.s32.totalorder %s26, 1
      %p217 = por %p215, %p216
      %p219 = scmp.ne.s32.totalorder %s204, %s218
      %p220 = scmp.eq.s32.totalorder %s26, 0
      %p221 = por %p219, %p220
      %s222 = ssub.s32 %s20, %s27
      %p223 = scmp.eq.s32.totalorder %s222, 0
      %s225 = sadd.s32 %s224, 1
      %s226 = scalar_select %p223, %s224, %s225
      %p229 = pneg %p223
      %p230 = scmp.eq.s32.totalorder %s20, 1
      %p231 = por %p229, %p230
      %p232 = scmp.ne.s32.totalorder %s224, %s227
      %p233 = scmp.eq.s32.totalorder %s20, 0
      %p234 = por %p232, %p233
      %p235 = scmp.ne.s32.totalorder %s224, %s227
      %p236 = scmp.eq.s32.totalorder %s25, 1
      %p237 = por %p235, %p236
      %p238 = scmp.ne.s32.totalorder %s227, %s228
      %p239 = scmp.eq.s32.totalorder %s25, 0
      %p240 = por %p238, %p239
      %p241 = scmp.ne.s32.totalorder %s227, %s228
      %p242 = scmp.eq.s32.totalorder %s26, 1
      %p243 = por %p241, %p242
      %p245 = scmp.ne.s32.totalorder %s228, %s244
      %p246 = scmp.eq.s32.totalorder %s26, 0
      %p247 = por %p245, %p246
      %p248 = scmp.le.s32.totalorder 1, %s20
      %p249 = scmp.lt.s32.totalorder %s20, 3
      %p250 = pnand %p248, %p249
      %p251 = pneg %p250
      // Predicated region
      $region9: #{tpu_custom_call.1} parent=5 // pred_check
        _
      $region10: #{tpu_custom_call.1} parent=5 // pred_check_branch
        %253 = sbr.rel (%p250) target = $region12
      $region11: #{tpu_custom_call.1} parent=5 // pred_region
        %s254 = ssub.s32 %s20, 1
        // Predicated region
        $region13: #{tpu_custom_call.1} parent=11 // pred_check
          %p255 = pneg %p67
        $region14: #{tpu_custom_call.1} parent=11 // pred_check_branch
          %257 = sbr.rel (%p255) target = $region16
        $region15: #{tpu_custom_call.1} parent=11 // pred_region
          _
        $region16: #{tpu_custom_call.1} parent=11 // pred_fallthru
          _
        // Predicated region
        $region17: #{tpu_custom_call.1} parent=11 // pred_check
          %p258 = pneg %p88
        $region18: #{tpu_custom_call.1} parent=11 // pred_check_branch
          %260 = sbr.rel (%p258) target = $region20
        $region19: #{tpu_custom_call.1} parent=11 // pred_region
          _
        $region20: #{tpu_custom_call.1} parent=11 // pred_fallthru
          _
        // Predicated region
        $region21: #{tpu_custom_call.1} parent=11 // pred_check
          %p261 = pneg %p109
        $region22: #{tpu_custom_call.1} parent=11 // pred_check_branch
          %263 = sbr.rel (%p261) target = $region24
        $region23: #{tpu_custom_call.1} parent=11 // pred_region
          _
        $region24: #{tpu_custom_call.1} parent=11 // pred_fallthru
          _
        // Predicated region
        $region25: #{tpu_custom_call.1} parent=11 // pred_check
          %p264 = pneg %p130
        $region26: #{tpu_custom_call.1} parent=11 // pred_check_branch
          %266 = sbr.rel (%p264) target = $region28
        $region27: #{tpu_custom_call.1} parent=11 // pred_region
          _
        $region28: #{tpu_custom_call.1} parent=11 // pred_fallthru
          _
        // Predicated region
        $region29: #{tpu_custom_call.1} parent=11 // pred_check
          %p267 = pneg %p151
        $region30: #{tpu_custom_call.1} parent=11 // pred_check_branch
          %269 = sbr.rel (%p267) target = $region32
        $region31: #{tpu_custom_call.1} parent=11 // pred_region
          _
        $region32: #{tpu_custom_call.1} parent=11 // pred_fallthru
          _
        // Predicated region
        $region33: #{tpu_custom_call.1} parent=11 // pred_check
          %p270 = pneg %p172
        $region34: #{tpu_custom_call.1} parent=11 // pred_check_branch
          %272 = sbr.rel (%p270) target = $region36
        $region35: #{tpu_custom_call.1} parent=11 // pred_region
          _
        $region36: #{tpu_custom_call.1} parent=11 // pred_fallthru
          _
        // Predicated region
        $region37: #{tpu_custom_call.1} parent=11 // pred_check
          %p273 = pneg %p193
        $region38: #{tpu_custom_call.1} parent=11 // pred_check_branch
          %275 = sbr.rel (%p273) target = $region40
        $region39: #{tpu_custom_call.1} parent=11 // pred_region
          _
        $region40: #{tpu_custom_call.1} parent=11 // pred_fallthru
          _
        // Predicated region
        $region41: #{tpu_custom_call.1} parent=11 // pred_check
          %p276 = pneg %p214
        $region42: #{tpu_custom_call.1} parent=11 // pred_check_branch
          %278 = sbr.rel (%p276) target = $region44
        $region43: #{tpu_custom_call.1} parent=11 // pred_region
          _
        $region44: #{tpu_custom_call.1} parent=11 // pred_fallthru
          _
      $region12: #{tpu_custom_call.1} parent=5 // pred_fallthru
        _
      %p279 = scmp.lt.s32.totalorder %s20, 2
      // Predicated region
      $region45: #{tpu_custom_call.1} parent=5 // pred_check
        %p280 = pneg %p279
      $region46: #{tpu_custom_call.1} parent=5 // pred_check_branch
        %282 = sbr.rel (%p280) target = $region48
      $region47: #{tpu_custom_call.1} parent=5 // pred_region
        // Predicated region
        $region49: #{tpu_custom_call.1} parent=47 // pred_check
          %p283 = pneg %p40
        $region50: #{tpu_custom_call.1} parent=47 // pred_check_branch
          %285 = sbr.rel (%p283) target = $region52
        $region51: #{tpu_custom_call.1} parent=47 // pred_region
          %s286 = smul.u32 2, %s20
          %p287 = scmp.lt.s32.totalorder %s286, 3
          %s288 = scalar_select %p287, %s286, 3
          %s289 = scalar_lea.vmem %s0, %s288
          %s290 = smul.u32 2, %s20
        $region52: #{tpu_custom_call.1} parent=47 // pred_fallthru
          _
      $region48: #{tpu_custom_call.1} parent=5 // pred_fallthru
        _
      %p291 = scmp.le.s32.totalorder 1, %s20
      %p292 = scmp.lt.s32.totalorder %s20, 3
      %p293 = pnand %p291, %p292
      %p294 = pneg %p293
      // Predicated region
      $region53: #{tpu_custom_call.1} parent=5 // pred_check
        _
      $region54: #{tpu_custom_call.1} parent=5 // pred_check_branch
        %296 = sbr.rel (%p293) target = $region56
      $region55: #{tpu_custom_call.1} parent=5 // pred_region
        %s297 = ssub.s32 %s20, 1
        %s298 = smul.u32 2, %s25
        %p299 = scmp.lt.s32.totalorder %s298, 3
        %s300 = scalar_select %p299, %s298, 3
        %s301 = scalar_lea.vmem %s0, %s300
        %p302 = pneg %p46
        %p303 = pneg %p43
        %p304 = pneg %p67
        %p305 = pneg %p64
        %p306 = pneg %p88
        %p307 = pneg %p85
        %p308 = pneg %p109
        %p309 = pneg %p106
        %p310 = pneg %p130
        %p311 = pneg %p127
        %p312 = pneg %p151
        %p313 = pneg %p148
        %p314 = pneg %p172
        %p315 = pneg %p169
        %p316 = pneg %p193
        %p317 = pneg %p190
        %p318 = pneg %p214
        %p319 = pneg %p211
        %p320 = pneg %p240
        %p321 = pneg %p237
        %s322 = sand.u32 %s227, 1
        %s323 = scalar_lea.sflag [#allocation4], %s322
        %s324 = sand.u32 %s227, 1
        %s325 = smul.addr %s324, 2
        %s326 = scalar_lea.vmem [#allocation3], %s325
        %s327 = smul.u32 2, %s25
        %p328 = scmp.lt.s32.totalorder %s327, 3
        %s329 = scalar_select %p328, %s327, 3
        %s330 = scalar_lea.vmem %s0, %s329
        %s331 = smul.u32 2, %s25
        %s332 = smul.u32 2, %s25
        %v333 = vld [vmem:[%s330] sm:$0x3]
        %v334 = vld [vmem:[%s2] sm:$0xff]
        %v335 = vld [vmem:[%s2 + $0x8] sm:$0xff]
        %v336 = vld [vmem:[%s2 + $0x10] sm:$0xff]
        %v337 = vld [vmem:[%s2 + $0x18] sm:$0xff]
        %v338 = vld [vmem:[%s1] sm:$0xff]
        %v339 = vld [vmem:[%s1 + $0x8] sm:$0xff]
        %v340 = vld [vmem:[%s1 + $0x10] sm:$0xff]
        %v341 = vld [vmem:[%s1 + $0x18] sm:$0xff]
        %343 = vset.pattern.permute.xlu0 0
        %344 = vperm.xlu0 %343, %v338
        %v345 = vpop.permute.xlu0 %344
        %348 = vset.pattern.permute.xlu0 0
        %349 = vperm.xlu0 %348, %v339
        %v350 = vpop.permute.xlu0 %349
        %353 = vset.pattern.permute.xlu0 0
        %354 = vperm.xlu0 %353, %v340
        %v355 = vpop.permute.xlu0 %354
        %358 = vset.pattern.permute.xlu0 0
        %359 = vperm.xlu0 %358, %v341
        %v360 = vpop.permute.xlu0 %359
        %v363 = vlaneseq
        %v364 = vshrl.u32 %v363, 7
        %v365 = vsub.s32 0, %v364
        %v366 = vrot.slane %v333, %v365
        %v367 = vlaneseq
        %v368 = vshrl.u32 %v367, 7
        %v369 = vsub.s32 1, %v368
        %v370 = vrot.slane %v333, %v369
        %v373 = vmul.f32 %v345, %v366
        %v374 = vmul.f32 %v345, %v370
        %v375 = vmul.f32 %v350, %v366
        %v376 = vmul.f32 %v350, %v370
        %v377 = vmul.f32 %v355, %v366
        %v378 = vmul.f32 %v355, %v370
        %v379 = vmul.f32 %v360, %v366
        %v380 = vmul.f32 %v360, %v370
        %382 = vset.pattern.permute.xlu0 0
        %383 = vperm.xlu0 %382, %v334
        %v384 = vpop.permute.xlu0 %383
        %387 = vset.pattern.permute.xlu0 0
        %388 = vperm.xlu0 %387, %v335
        %v389 = vpop.permute.xlu0 %388
        %392 = vset.pattern.permute.xlu0 0
        %393 = vperm.xlu0 %392, %v336
        %v394 = vpop.permute.xlu0 %393
        %397 = vset.pattern.permute.xlu0 0
        %398 = vperm.xlu0 %397, %v337
        %v399 = vpop.permute.xlu0 %398
        %v401 = vadd.f32 %v384, %v373
        %v402 = vadd.f32 %v384, %v374
        %v403 = vadd.f32 %v389, %v375
        %v404 = vadd.f32 %v389, %v376
        %v405 = vadd.f32 %v394, %v377
        %v406 = vadd.f32 %v394, %v378
        %v407 = vadd.f32 %v399, %v379
        %v408 = vadd.f32 %v399, %v380
        %v409 = vtanh.pop %v401
        %v410 = vtanh.pop %v402
        %v411 = vtanh.pop %v403
        %v412 = vtanh.pop %v404
        %v413 = vtanh.pop %v405
        %v414 = vtanh.pop %v406
        %v415 = vtanh.pop %v407
        %v416 = vtanh.pop %v408
        %v417 = vld [vmem:[%s4] sm:$0xff]
        %v418 = vld [vmem:[%s4 + $0x8] sm:$0xff]
        %v419 = vld [vmem:[%s4 + $0x10] sm:$0xff]
        %v420 = vld [vmem:[%s4 + $0x18] sm:$0xff]
        %v421 = vld [vmem:[%s3] sm:$0xff]
        %v422 = vld [vmem:[%s3 + $0x8] sm:$0xff]
        %v423 = vld [vmem:[%s3 + $0x10] sm:$0xff]
        %v424 = vld [vmem:[%s3 + $0x18] sm:$0xff]
        %426 = vset.pattern.permute.xlu0 0
        %427 = vperm.xlu0 %426, %v417
        %v428 = vpop.permute.xlu0 %427
        %431 = vset.pattern.permute.xlu0 0
        %432 = vperm.xlu0 %431, %v418
        %v433 = vpop.permute.xlu0 %432
        %436 = vset.pattern.permute.xlu0 0
        %437 = vperm.xlu0 %436, %v419
        %v438 = vpop.permute.xlu0 %437
        %441 = vset.pattern.permute.xlu0 0
        %442 = vperm.xlu0 %441, %v420
        %v443 = vpop.permute.xlu0 %442
        %vm445 = vcmask 261120
        %v447 = vsel %vm445, %v421, 0
        %v450 = vsel %vm445, %v422, 0
        %v453 = vsel %vm445, %v423, 0
        %v456 = vsel %vm445, %v424, 0
        %458 = vmatprep.subr.mxu0 0.0
        %459 = vmatpush1.msra.mxu0 0.0
        %460 = vmatprep.subr.mxu0 0.0
        %461 = vmatpush1.msra.mxu0 0.0
        %462 = vmatprep.subr.mxu0 0.0
        %463 = vmatpush1.msra.mxu0 0.0
        %464 = vmatprep.subr.mxu0 0.0
        %465 = vmatpush1.msra.mxu0 0.0
        %466 = vmatprep.subr.mxu0 0.0
        %467 = vmatpush1.msra.mxu0 0.0
        %468 = vmatprep.subr.mxu0 0.0
        %469 = vmatpush1.msra.mxu0 0.0
        %470 = vmatprep.subr.mxu0 0.0
        %471 = vmatpush1.msra.mxu0 0.0
        %472 = vmatprep.subr.mxu0 0.0
        %473 = vmatpush1.msra.mxu0 0.0
        %474 = vmatprep.subr.mxu0 0.0
        %475 = vmatpush1.msra.mxu0 0.0
        %476 = vmatprep.subr.mxu0 0.0
        %477 = vmatpush1.msra.mxu0 0.0
        %478 = vmatprep.subr.mxu0 0.0
        %479 = vmatpush1.msra.mxu0 0.0
        %480 = vmatprep.subr.mxu0 0.0
        %481 = vmatpush1.msra.mxu0 0.0
        %482 = vmatprep.subr.mxu0 %v416
        %483 = vmatpush1.msra.mxu0 %v415
        %484 = vmatprep.subr.mxu0 %v414
        %485 = vmatpush1.msra.mxu0 %v413
        %486 = vmatprep.subr.mxu0 %v412
        %487 = vmatpush1.msra.mxu0 %v411
        %488 = vmatprep.subr.mxu0 %v410
        %489 = vmatpush1.msra.mxu0 %v409
        %490 = vmatprep.subr.mxu0 0.0
        %491 = vmatpush2.msra.mxu0 0.0
        %492 = vmatprep.subr.mxu0 0.0
        %493 = vmatpush2.msra.mxu0 0.0
        %494 = vmatprep.subr.mxu0 0.0
        %495 = vmatpush2.msra.mxu0 0.0
        %496 = vmatprep.subr.mxu0 0.0
        %497 = vmatpush2.msra.mxu0 0.0
        %498 = vmatprep.subr.mxu0 0.0
        %499 = vmatpush2.msra.mxu0 0.0
        %500 = vmatprep.subr.mxu0 0.0
        %501 = vmatpush2.msra.mxu0 0.0
        %502 = vmatprep.subr.mxu0 0.0
        %503 = vmatpush2.msra.mxu0 0.0
        %504 = vmatprep.subr.mxu0 0.0
        %505 = vmatpush2.msra.mxu0 0.0
        %506 = vmatprep.subr.mxu0 0.0
        %507 = vmatpush2.msra.mxu0 0.0
        %508 = vmatprep.subr.mxu0 0.0
        %509 = vmatpush2.msra.mxu0 0.0
        %510 = vmatprep.subr.mxu0 0.0
        %511 = vmatpush2.msra.mxu0 0.0
        %512 = vmatprep.subr.mxu0 0.0
        %513 = vmatpush2.msra.mxu0 0.0
        %514 = vmatprep.subr.mxu0 0.0
        %515 = vmatpush2.msra.mxu0 0.0
        %516 = vmatprep.subr.mxu0 0.0
        %517 = vmatpush2.msra.mxu0 0.0
        %518 = vmatprep.subr.mxu0 0.0
        %519 = vmatpush2.msra.mxu0 0.0
        %520 = vmatprep.subr.mxu0 0.0
        %521 = vmatpush2.msra.mxu0 0.0
        %522 = vmatprep.mubr.f32.mxu0 0.0
        %523 = vmatmul.mubr.f32.gmra.mxu0 %v447
        %v524 = vpop.f32.mrf.mxu0
        %v525 = vadd.f32 %v428, %v524
        %v526 = vpop.f32.mrf.mxu0
        %v527 = vadd.f32 %v428, %v526
        %528 = vmatprep.mubr.f32.mxu0 0.0
        %529 = vmatmul.mubr.f32.gmra.mxu0 %v450
        %v530 = vpop.f32.mrf.mxu0
        %v531 = vadd.f32 %v433, %v530
        %v532 = vpop.f32.mrf.mxu0
        %v533 = vadd.f32 %v433, %v532
        %534 = vmatprep.mubr.f32.mxu0 0.0
        %535 = vmatmul.mubr.f32.gmra.mxu0 %v453
        %v536 = vpop.f32.mrf.mxu0
        %v537 = vadd.f32 %v438, %v536
        %v538 = vpop.f32.mrf.mxu0
        %v539 = vadd.f32 %v438, %v538
        %540 = vmatprep.mubr.f32.mxu0 0.0
        %541 = vmatmul.mubr.f32.gmra.mxu0 %v456
        %v542 = vpop.f32.mrf.mxu0
        %v543 = vadd.f32 %v443, %v542
        %v544 = vpop.f32.mrf.mxu0
        %v545 = vadd.f32 %v443, %v544
        %546 = vdwg.mxu0
        %v547 = vtanh.pop %v525
        %v548 = vtanh.pop %v527
        %v549 = vtanh.pop %v531
        %v550 = vtanh.pop %v533
        %v551 = vtanh.pop %v537
        %v552 = vtanh.pop %v539
        %v553 = vtanh.pop %v543
        %v554 = vtanh.pop %v545
        %v555 = vld [vmem:[%s6] sm:$0xff]
        %v556 = vld [vmem:[%s6 + $0x8] sm:$0xff]
        %v557 = vld [vmem:[%s6 + $0x10] sm:$0xff]
        %v558 = vld [vmem:[%s6 + $0x18] sm:$0xff]
        %v559 = vld [vmem:[%s5] sm:$0xff]
        %v560 = vld [vmem:[%s5 + $0x8] sm:$0xff]
        %v561 = vld [vmem:[%s5 + $0x10] sm:$0xff]
        %v562 = vld [vmem:[%s5 + $0x18] sm:$0xff]
        %564 = vset.pattern.permute.xlu0 0
        %565 = vperm.xlu0 %564, %v555
        %v566 = vpop.permute.xlu0 %565
        %569 = vset.pattern.permute.xlu0 0
        %570 = vperm.xlu0 %569, %v556
        %v571 = vpop.permute.xlu0 %570
        %574 = vset.pattern.permute.xlu0 0
        %575 = vperm.xlu0 %574, %v557
        %v576 = vpop.permute.xlu0 %575
        %579 = vset.pattern.permute.xlu0 0
        %580 = vperm.xlu0 %579, %v558
        %v581 = vpop.permute.xlu0 %580
        %v584 = vsel %vm445, %v559, 0
        %v587 = vsel %vm445, %v560, 0
        %v590 = vsel %vm445, %v561, 0
        %v593 = vsel %vm445, %v562, 0
        %595 = vmatprep.subr.mxu0 0.0
        %596 = vmatpush1.msra.mxu0 0.0
        %597 = vmatprep.subr.mxu0 0.0
        %598 = vmatpush1.msra.mxu0 0.0
        %599 = vmatprep.subr.mxu0 0.0
        %600 = vmatpush1.msra.mxu0 0.0
        %601 = vmatprep.subr.mxu0 0.0
        %602 = vmatpush1.msra.mxu0 0.0
        %603 = vmatprep.subr.mxu0 0.0
        %604 = vmatpush1.msra.mxu0 0.0
        %605 = vmatprep.subr.mxu0 0.0
        %606 = vmatpush1.msra.mxu0 0.0
        %607 = vmatprep.subr.mxu0 0.0
        %608 = vmatpush1.msra.mxu0 0.0
        %609 = vmatprep.subr.mxu0 0.0
        %610 = vmatpush1.msra.mxu0 0.0
        %611 = vmatprep.subr.mxu0 0.0
        %612 = vmatpush1.msra.mxu0 0.0
        %613 = vmatprep.subr.mxu0 0.0
        %614 = vmatpush1.msra.mxu0 0.0
        %615 = vmatprep.subr.mxu0 0.0
        %616 = vmatpush1.msra.mxu0 0.0
        %617 = vmatprep.subr.mxu0 0.0
        %618 = vmatpush1.msra.mxu0 0.0
        %619 = vmatprep.subr.mxu0 %v554
        %620 = vmatpush1.msra.mxu0 %v553
        %621 = vmatprep.subr.mxu0 %v552
        %622 = vmatpush1.msra.mxu0 %v551
        %623 = vmatprep.subr.mxu0 %v550
        %624 = vmatpush1.msra.mxu0 %v549
        %625 = vmatprep.subr.mxu0 %v548
        %626 = vmatpush1.msra.mxu0 %v547
        %627 = vmatprep.subr.mxu0 0.0
        %628 = vmatpush2.msra.mxu0 0.0
        %629 = vmatprep.subr.mxu0 0.0
        %630 = vmatpush2.msra.mxu0 0.0
        %631 = vmatprep.subr.mxu0 0.0
        %632 = vmatpush2.msra.mxu0 0.0
        %633 = vmatprep.subr.mxu0 0.0
        %634 = vmatpush2.msra.mxu0 0.0
        %635 = vmatprep.subr.mxu0 0.0
        %636 = vmatpush2.msra.mxu0 0.0
        %637 = vmatprep.subr.mxu0 0.0
        %638 = vmatpush2.msra.mxu0 0.0
        %639 = vmatprep.subr.mxu0 0.0
        %640 = vmatpush2.msra.mxu0 0.0
        %641 = vmatprep.subr.mxu0 0.0
        %642 = vmatpush2.msra.mxu0 0.0
        %643 = vmatprep.subr.mxu0 0.0
        %644 = vmatpush2.msra.mxu0 0.0
        %645 = vmatprep.subr.mxu0 0.0
        %646 = vmatpush2.msra.mxu0 0.0
        %647 = vmatprep.subr.mxu0 0.0
        %648 = vmatpush2.msra.mxu0 0.0
        %649 = vmatprep.subr.mxu0 0.0
        %650 = vmatpush2.msra.mxu0 0.0
        %651 = vmatprep.subr.mxu0 0.0
        %652 = vmatpush2.msra.mxu0 0.0
        %653 = vmatprep.subr.mxu0 0.0
        %654 = vmatpush2.msra.mxu0 0.0
        %655 = vmatprep.subr.mxu0 0.0
        %656 = vmatpush2.msra.mxu0 0.0
        %657 = vmatprep.subr.mxu0 0.0
        %658 = vmatpush2.msra.mxu0 0.0
        %659 = vmatprep.mubr.f32.mxu0 0.0
        %660 = vmatmul.mubr.f32.gmra.mxu0 %v584
        %v661 = vpop.f32.mrf.mxu0
        %v662 = vadd.f32 %v566, %v661
        %v663 = vpop.f32.mrf.mxu0
        %v664 = vadd.f32 %v566, %v663
        %665 = vmatprep.mubr.f32.mxu0 0.0
        %666 = vmatmul.mubr.f32.gmra.mxu0 %v587
        %v667 = vpop.f32.mrf.mxu0
        %v668 = vadd.f32 %v571, %v667
        %v669 = vpop.f32.mrf.mxu0
        %v670 = vadd.f32 %v571, %v669
        %671 = vmatprep.mubr.f32.mxu0 0.0
        %672 = vmatmul.mubr.f32.gmra.mxu0 %v590
        %v673 = vpop.f32.mrf.mxu0
        %v674 = vadd.f32 %v576, %v673
        %v675 = vpop.f32.mrf.mxu0
        %v676 = vadd.f32 %v576, %v675
        %677 = vmatprep.mubr.f32.mxu0 0.0
        %678 = vmatmul.mubr.f32.gmra.mxu0 %v593
        %v679 = vpop.f32.mrf.mxu0
        %v680 = vadd.f32 %v581, %v679
        %v681 = vpop.f32.mrf.mxu0
        %v682 = vadd.f32 %v581, %v681
        %683 = vdwg.mxu0
        %v684 = vtanh.pop %v662
        %v685 = vtanh.pop %v664
        %v686 = vtanh.pop %v668
        %v687 = vtanh.pop %v670
        %v688 = vtanh.pop %v674
        %v689 = vtanh.pop %v676
        %v690 = vtanh.pop %v680
        %v691 = vtanh.pop %v682
        %v692 = vld [vmem:[#allocation2] sm:$0x1]
        %v693 = vld [vmem:[%s7] sm:$0x1]
        %695 = vset.pattern.permute.xlu0 0
        %696 = vperm.xlu0 %695, %v692
        %v697 = vpop.permute.xlu0 %696
        %v699 = vlaneseq
        %v700 = vshrl.u32 %v699, 7
        %v701 = vsub.s32 0, %v700
        %v702 = vrot.slane %v697, %v701
        %v704 = vsel %vm445, %v693, 0
        %706 = vmatprep.subr.mxu0 0.0
        %707 = vmatpush1.msra.mxu0 0.0
        %708 = vmatprep.subr.mxu0 0.0
        %709 = vmatpush1.msra.mxu0 0.0
        %710 = vmatprep.subr.mxu0 0.0
        %711 = vmatpush1.msra.mxu0 0.0
        %712 = vmatprep.subr.mxu0 0.0
        %713 = vmatpush1.msra.mxu0 0.0
        %714 = vmatprep.subr.mxu0 0.0
        %715 = vmatpush1.msra.mxu0 0.0
        %716 = vmatprep.subr.mxu0 0.0
        %717 = vmatpush1.msra.mxu0 0.0
        %718 = vmatprep.subr.mxu0 0.0
        %719 = vmatpush1.msra.mxu0 0.0
        %720 = vmatprep.subr.mxu0 0.0
        %721 = vmatpush1.msra.mxu0 0.0
        %722 = vmatprep.subr.mxu0 0.0
        %723 = vmatpush1.msra.mxu0 0.0
        %724 = vmatprep.subr.mxu0 0.0
        %725 = vmatpush1.msra.mxu0 0.0
        %726 = vmatprep.subr.mxu0 0.0
        %727 = vmatpush1.msra.mxu0 0.0
        %728 = vmatprep.subr.mxu0 0.0
        %729 = vmatpush1.msra.mxu0 0.0
        %730 = vmatprep.subr.mxu0 %v691
        %731 = vmatpush1.msra.mxu0 %v690
        %732 = vmatprep.subr.mxu0 %v689
        %733 = vmatpush1.msra.mxu0 %v688
        %734 = vmatprep.subr.mxu0 %v687
        %735 = vmatpush1.msra.mxu0 %v686
        %736 = vmatprep.subr.mxu0 %v685
        %737 = vmatpush1.msra.mxu0 %v684
        %738 = vmatprep.subr.mxu0 0.0
        %739 = vmatpush2.msra.mxu0 0.0
        %740 = vmatprep.subr.mxu0 0.0
        %741 = vmatpush2.msra.mxu0 0.0
        %742 = vmatprep.subr.mxu0 0.0
        %743 = vmatpush2.msra.mxu0 0.0
        %744 = vmatprep.subr.mxu0 0.0
        %745 = vmatpush2.msra.mxu0 0.0
        %746 = vmatprep.subr.mxu0 0.0
        %747 = vmatpush2.msra.mxu0 0.0
        %748 = vmatprep.subr.mxu0 0.0
        %749 = vmatpush2.msra.mxu0 0.0
        %750 = vmatprep.subr.mxu0 0.0
        %751 = vmatpush2.msra.mxu0 0.0
        %752 = vmatprep.subr.mxu0 0.0
        %753 = vmatpush2.msra.mxu0 0.0
        %754 = vmatprep.subr.mxu0 0.0
        %755 = vmatpush2.msra.mxu0 0.0
        %756 = vmatprep.subr.mxu0 0.0
        %757 = vmatpush2.msra.mxu0 0.0
        %758 = vmatprep.subr.mxu0 0.0
        %759 = vmatpush2.msra.mxu0 0.0
        %760 = vmatprep.subr.mxu0 0.0
        %761 = vmatpush2.msra.mxu0 0.0
        %762 = vmatprep.subr.mxu0 0.0
        %763 = vmatpush2.msra.mxu0 0.0
        %764 = vmatprep.subr.mxu0 0.0
        %765 = vmatpush2.msra.mxu0 0.0
        %766 = vmatprep.subr.mxu0 0.0
        %767 = vmatpush2.msra.mxu0 0.0
        %768 = vmatprep.subr.mxu0 0.0
        %769 = vmatpush2.msra.mxu0 0.0
        %770 = vmatprep.mubr.f32.mxu0 0.0
        %771 = vmatmul.mubr.f32.gmra.mxu0 %v704
        %v772 = vpop.f32.mrf.mxu0
        %v773 = vadd.f32 %v702, %v772
        %v774 = vpop.f32.mrf.mxu0
        %v775 = vadd.f32 %v702, %v774
        %776 = vdwg.mxu0
        %v779 = vcombine.low %v773, %v775
        %v781 = vunpack.c.l.s4 1966171168
        %v782 = vunpack.c.0.s8 %v781
        %v783 = vlaneseq
        %v784 = vshrl.u32 %v783, 7
        %v785 = vsub.s32 %v782, %v784
        %v786 = vrot.slane %v779, %v785
        %v788 = vunpack.c.l.s4 1966171168
        %v789 = vunpack.c.0.s8 %v788
        %v790 = vlaneseq
        %v791 = vshrl.u32 %v790, 7
        %v792 = vsub.s32 %v789, %v791
        %v793 = vrot.slane %v786, %v792
        %v795 = vlaneseq
        %vm796 = vcmp.ge.s32.totalorder %v795, 0
        %vm797 = vcmp.lt.s32.totalorder %v795, 256
        %vm798 = vmand %vm796, %vm797
        %799 = vst.msk [vmem:[%s326] sm:$0x3] %vm798, %v793
        %s800 = sand.u32 %s227, 1
        %s801 = scalar_lea.sflag [#allocation4], %s800
        %s802 = sand.u32 %s227, 1
        %s803 = smul.addr %s802, 2
        %s804 = scalar_lea.vmem [#allocation3], %s803
        // Predicated region
        $region57: #{tpu_custom_call.1} parent=55 // pred_check
          %p805 = pneg %p237
        $region58: #{tpu_custom_call.1} parent=55 // pred_check_branch
          %807 = sbr.rel (%p805) target = $region60
        $region59: #{tpu_custom_call.1} parent=55 // pred_region
          %s808 = smul.u32 2, %s25
          %s810 = ssub.s32 32, 32
          %811 = vsyncadd %s801, %s810
          %s812 = smul.addr %s808, 16
          %s813 = scalar_lea.hbm %s9, %s812
          %s815 = sshll.u32 %s804, 4
          %s816 = int_to_ptr.vmem [resolvable:$true] %s815
          %818 = dma.vmem_to_hbm [thread:$0]  %s816, 32, %s813, %s801
        $region60: #{tpu_custom_call.1} parent=55 // pred_fallthru
          _
      $region56: #{tpu_custom_call.1} parent=5 // pred_fallthru
        _
      %p819 = scmp.le.s32.totalorder 2, %s20
      // Predicated region
      $region61: #{tpu_custom_call.1} parent=5 // pred_check
        %p820 = pneg %p819
      $region62: #{tpu_custom_call.1} parent=5 // pred_check_branch
        %822 = sbr.rel (%p820) target = $region64
      $region63: #{tpu_custom_call.1} parent=5 // pred_region
        %s823 = ssub.s32 %s20, 2
        // Predicated region
        $region65: #{tpu_custom_call.1} parent=63 // pred_check
          %p824 = pneg %p243
        $region66: #{tpu_custom_call.1} parent=63 // pred_check_branch
          %826 = sbr.rel (%p824) target = $region68
        $region67: #{tpu_custom_call.1} parent=63 // pred_region
          %s827 = sand.u32 %s228, 1
          %s828 = scalar_lea.sflag [#allocation4], %s827
          %s829 = sand.u32 %s228, 1
          %s830 = smul.addr %s829, 2
          %s831 = scalar_lea.vmem [#allocation3], %s830
          %832 = dma.done %s828, 32
        $region68: #{tpu_custom_call.1} parent=63 // pred_fallthru
          _
      $region64: #{tpu_custom_call.1} parent=5 // pred_fallthru
        _
    $region6: #{tpu_custom_call.1} parent=1 // loop_footer
      %s24 = sadd.s32 1, %s20
    $region7: #{tpu_custom_call.1} parent=1 // loop_footer_branch
      %19 = sbr.rel target = $region3
    $region8: #{tpu_custom_call.1} parent=1 // loop_exit
      _
    %833 = vsyncpa [#allocation4], 1
    %s834 = scalar_lea.sflag [#allocation4], 1
    %835 = vsyncpa %s834, 1

</llo_original>
